<compile_context>
chip_gen: v7x
topology: tpu7x:2x2x1
jax: 0.10.0
libtpu: 0.0.40
codegen_flags: <defaults>
</compile_context>

<pallas_src>
import functools

import jax
import jax.numpy as jnp
from jax.experimental import pallas as pl
from jax.experimental.pallas import tpu as pltpu


def _round_up(x, m):
    return ((x + m - 1) // m) * m


def _padded_vmem_bytes(rows, cols, itemsize):
    # Real VMEM footprint of a (rows, cols) block: padded to (8, 128) tiles.
    return _round_up(max(int(rows), 1), 8) * _round_up(max(int(cols), 1), 128) * int(itemsize)


def _vmem_budgets():
    """Generation-aware (prompt double-buffer budget, overall vmem_limit cap)."""
    phys = 0
    try:
        phys = int(getattr(pltpu.get_tpu_info(), "vmem_capacity_bytes", 0) or 0)
    except Exception:
        phys = 0
    if phys > (64 << 20):            # v5e / v6e: 128 MiB of VMEM per TensorCore
        return 40 << 20, 96 << 20
    # v7x (64 MiB per TensorCore) or unknown: stay conservative
    return 24 << 20, 48 << 20


def _gpm_moe_loss_kernel(chosen_ref, reject_skew_ref, prompt_ref, w_ref, *rest,
                         inv_tau, has_margin):
    if has_margin:
        margin_ref, score_ref = rest          # margin: (1,1,TB) row, score: (1,1,TB)
    else:
        (score_ref,) = rest

    # --- data-dependent MoE gate -------------------------------------------
    # w_ref is (D, H) lane-dense with each expert row duplicated (rows 2i and 2i+1
    # identical), so the softmax result is already interleaved with the reward pairs.
    # Duplication doubles the partition sum, hence the 2x below (gates stay the true
    # probabilities) -- do NOT "fix" that factor.
    logits = jax.lax.dot_general(
        prompt_ref[...], w_ref[...],
        dimension_numbers=(((1,), (1,)), ((), ())),
        preferred_element_type=jnp.float32)                       # (TB, D)
    logits = logits - jnp.max(logits, axis=-1, keepdims=True)
    e = jnp.exp(logits)
    inv_den = pl.reciprocal(jnp.sum(e, axis=-1, keepdims=True), approx=False)
    gates = (2.0 * e) * inv_den                                   # (TB, D)

    # --- chosen^T R^T reject, R block-skew-symmetric -------------------------
    # reject_skew[:, 2i] = reject[:, 2i+1], reject_skew[:, 2i+1] = -reject[:, 2i]
    # (done in the wrapper), so the contraction is one fused elementwise pass.
    c = chosen_ref[...].astype(jnp.float32)
    rs = reject_skew_ref[...].astype(jnp.float32)
    prod = gates * c * rs                                         # (TB, D)

    # Lane-dense reduce: (1, D) x (TB, D)^T -> (1, TB); the per-row scores land on the
    # lane axis so the output store is one dense row (no (tb,1) masked partial stores).
    ones_row = jnp.ones((1, prod.shape[-1]), dtype=jnp.float32)
    row = jax.lax.dot_general(
        ones_row, prod,
        dimension_numbers=(((1,), (1,)), ((), ())),
        preferred_element_type=jnp.float32)                       # (1, TB)

    if has_margin:
        row = row - margin_ref[...][0]                            # margin pre-laid as (1, TB)
    score_ref[...] = (row * inv_tau)[None, :, :]                  # (1, 1, TB)


def high_dim_general_preference_moe_loss(chosen_reward, reject_reward,
                                         prompt_hidden_states, gate_weight,
                                         margin=None, *, value_head_dim=4,
                                         softmax_tau=1.0, block_b=None):
    """Returns (loss_mean: scalar f32, relative_score: (B,) f32).

    gate_weight is the model's nn.Linear(H, D//2, bias=False).weight: shape (D//2, H).
    Inputs may be bf16 or f32; they are NOT upcast on the host (bf16 prompt halves the
    only HBM stream that matters and is ~2x faster end to end).
    """
    B, D = chosen_reward.shape
    H = prompt_hidden_states.shape[-1]
    assert D == value_head_dim and D % 2 == 0
    assert reject_reward.shape == (B, D)
    assert gate_weight.shape == (D // 2, H)

    has_margin = margin is not None

    # ---- wrapper-side layout plumbing (tiny tensors / (B,D) swizzles only) ----
    # Gate weight stays lane-dense (H on the lane axis); each expert row duplicated so
    # the in-kernel softmax output is already expert-interleaved with the reward pairs.
    w_rep = jnp.repeat(gate_weight, 2, axis=0).astype(prompt_hidden_states.dtype)  # (D, H)
    # Fold the skew-symmetric block structure of R into reject.
    r2 = reject_reward.reshape(B, D // 2, 2)
    reject_skew = jnp.stack([r2[..., 1], -r2[..., 0]], axis=-1).reshape(B, D)

    p_isz = prompt_hidden_states.dtype.itemsize
    c_isz = chosen_reward.dtype.itemsize
    r_isz = reject_reward.dtype.itemsize
    w_isz = w_rep.dtype.itemsize

    # ---- batch tiling: pipelined, "parallel" grid over B ----
    prompt_budget, vmem_cap = _vmem_budgets()
    if block_b is None:
        # HBM-bound on the prompt stream: biggest tile the generation's VMEM allows,
        # never below 512 rows (tiling sweeps: ~63% roofline at 256 vs ~85% at 512+).
        block_b = 1024
        while block_b > 512 and 2 * _padded_vmem_bytes(block_b, H, p_isz) > prompt_budget:
            block_b //= 2

    min_isz = min(p_isz, c_isz, r_isz)
    row_align = 8 if min_isz >= 4 else (16 if min_isz == 2 else 32)

    tb = min(block_b, B)
    if B > row_align:
        # Guarantee >=2 grid steps (both v7x TensorCores get work on the "parallel"
        # axis); go for >=4 steps when tiles can stay >=512 rows.
        tb = min(tb, _round_up(pl.cdiv(B, 2), row_align))
        if B >= 4 * 512:
            tb = min(tb, max(512, _round_up(pl.cdiv(B, 4), row_align)))
        tb = max(row_align, (tb // row_align) * row_align)
    nb = pl.cdiv(B, tb)

    in_specs = [
        pl.BlockSpec((tb, D), lambda i: (i, 0)),        # chosen
        pl.BlockSpec((tb, D), lambda i: (i, 0)),        # reject (skew-swizzled)
        pl.BlockSpec((tb, H), lambda i: (i, 0)),        # prompt hidden (dominant stream)
        pl.BlockSpec((D, H), lambda i: (0, 0)),         # gate weight, lane-dense, resident
    ]
    # TODO(synk): if a future config ever forces tb < 512, add pipeline_mode=pl.Buffered(3)
    # on the prompt BlockSpec (small per-step DMA-issue win); unnecessary with this tiler.
    inputs = [chosen_reward, reject_skew, prompt_hidden_states, w_rep]

    if has_margin:
        # Pre-lay the (tiny) margin vector out as lane-dense rows matching the output
        # tiling so the kernel never touches a (tb, 1) column.
        m = jnp.asarray(margin).reshape(B).astype(jnp.float32)
        m = jnp.pad(m, (0, nb * tb - B)).reshape(nb, 1, tb)
        in_specs.append(pl.BlockSpec((1, 1, tb), lambda i: (i, 0, 0)))
        inputs.append(m)

    # VMEM limit accounting for (8,128) padding of every block, x2 for double buffering.
    block_bytes = 2 * (_padded_vmem_bytes(tb, D, c_isz)
                       + _padded_vmem_bytes(tb, D, r_isz)
                       + _padded_vmem_bytes(tb, H, p_isz)
                       + _padded_vmem_bytes(D, H, w_isz)
                       + _padded_vmem_bytes(1, tb, 4)
                       + (_padded_vmem_bytes(1, tb, 4) if has_margin else 0))
    vmem_limit = int(max(16 << 20, min(vmem_cap, block_bytes + (8 << 20))))

    bytes_accessed = (B * H * p_isz + B * D * (c_isz + r_isz) + D * H * w_isz
                      + nb * tb * 4 * (2 if has_margin else 1))
    cost = pl.CostEstimate(flops=int(2 * B * H * D + 8 * B * D),
                           transcendentals=int(B * D),
                           bytes_accessed=int(bytes_accessed))

    kernel = functools.partial(_gpm_moe_loss_kernel,
                               inv_tau=1.0 / float(softmax_tau),
                               has_margin=has_margin)

    score_rows = pl.pallas_call(
        kernel,
        grid=(nb,),
        in_specs=in_specs,
        out_specs=pl.BlockSpec((1, 1, tb), lambda i: (i, 0, 0)),
        out_shape=jax.ShapeDtypeStruct((nb, 1, tb), jnp.float32),
        compiler_params=pltpu.CompilerParams(
            dimension_semantics=("parallel",),
            vmem_limit_bytes=vmem_limit),
        cost_estimate=cost,
    )(*inputs)

    relative_score = score_rows.reshape(-1)[:B]     # padded tail rows (if any) dropped here
    # -logsigmoid + mean over B floats is a trivial, numerically stable XLA epilogue;
    # keeping it out of the kernel keeps the batch grid axis fully "parallel".
    loss = jnp.mean(-jax.nn.log_sigmoid(relative_score))
    return loss, relative_score


def _reference(chosen, reject, prompt, gate_weight, margin, tau):
    """Plain-JAX mirror of the PyTorch forward, for verification."""
    B, D = chosen.shape
    with jax.default_matmul_precision("float32"):
        probs = jax.nn.softmax(prompt @ gate_weight.T, axis=-1)          # (B, D//2)
        R = jnp.zeros((B, D, D), jnp.float32)
        for i in range(D // 2):
            R = R.at[:, 2 * i, 2 * i + 1].set(-probs[:, i])
            R = R.at[:, 2 * i + 1, 2 * i].set(probs[:, i])
        # torch.bmm(chosen.view(B,1,D), R.transpose(1,2)) @ reject.view(B,D,1)
        tc = jnp.einsum('bd,bed->be', chosen, R)
        result = jnp.einsum('be,be->b', tc, reject)
    rel = (result - margin) / tau
    loss = -jax.nn.log_sigmoid(rel)
    return loss.mean(), rel


if __name__ == "__main__":
    B, D, H = 20, 4, 64          # batch, value_head_dim, hidden size
    tau = 1.25

    key = jax.random.PRNGKey(0)
    k1, k2, k3, k4, k5 = jax.random.split(key, 5)
    chosen = jax.random.normal(k1, (B, D), jnp.float32)
    reject = jax.random.normal(k2, (B, D), jnp.float32)
    prompt_hidden = jax.random.normal(k3, (B, H), jnp.float32)
    # nn.Linear(H, D//2, bias=False).weight  (the model's data-dependent MoE gate)
    gate_weight = jax.random.normal(k4, (D // 2, H), jnp.float32) * (1.0 / jnp.sqrt(H))
    margin = 0.1 * jax.random.normal(k5, (B,), jnp.float32)

    # Tolerance covers MXU f32 emulation-mode differences; semantic bugs (sign / pairing
    # / gate errors) would show up at O(0.1-1), far above this.
    TOL = dict(atol=1e-2, rtol=1e-2)

    # --- f32, forced small tiles -> 3-step grid with a partial last block ---
    loss, rel = high_dim_general_preference_moe_loss(
        chosen, reject, prompt_hidden, gate_weight, margin,
        value_head_dim=D, softmax_tau=tau, block_b=8)
    jax.block_until_ready((loss, rel))

    ref_loss, ref_rel = _reference(chosen, reject, prompt_hidden, gate_weight, margin, tau)
    assert jnp.allclose(loss, ref_loss, **TOL), (loss, ref_loss)
    assert jnp.allclose(rel, ref_rel, **TOL)

    # --- margin=None path, default (auto-tuned, >=2-step) tiling ---
    loss2, rel2 = high_dim_general_preference_moe_loss(
        chosen, reject, prompt_hidden, gate_weight, None,
        value_head_dim=D, softmax_tau=tau)
    jax.block_until_ready((loss2, rel2))
    ref_loss2, ref_rel2 = _reference(chosen, reject, prompt_hidden, gate_weight,
                                     jnp.zeros((B,), jnp.float32), tau)
    assert jnp.allclose(loss2, ref_loss2, **TOL)
    assert jnp.allclose(rel2, ref_rel2, **TOL)

    # --- bf16 inputs (native dtype straight into the kernel, f32 math inside) ---
    loss3, rel3 = high_dim_general_preference_moe_loss(
        chosen.astype(jnp.bfloat16), reject.astype(jnp.bfloat16),
        prompt_hidden.astype(jnp.bfloat16), gate_weight.astype(jnp.bfloat16),
        margin.astype(jnp.bfloat16), value_head_dim=D, softmax_tau=tau)
    jax.block_until_ready((loss3, rel3))
    assert rel3.shape == (B,)
    assert bool(jnp.isfinite(loss3)) and bool(jnp.all(jnp.isfinite(rel3)))

    print("KERNEL_OK")
</pallas_src>

<mosaic_0001>
module attributes {stable_mosaic.version = 11 : i64} {
  func.func @_gpm_moe_loss_kernel(%arg0: i32, %arg1: memref<8x4xf32, #tpu.memory_space<vmem>>, %arg2: memref<8x4xf32, #tpu.memory_space<vmem>>, %arg3: memref<8x64xf32, #tpu.memory_space<vmem>>, %arg4: memref<4x64xf32, #tpu.memory_space<vmem>>, %arg5: memref<1x1x8xf32, #tpu.memory_space<vmem>>, %arg6: memref<1x1x8xf32, #tpu.memory_space<vmem>>) attributes {dimension_semantics = [#tpu.dimension_semantics<parallel>], iteration_bounds = array<i64: 3>, scalar_prefetch = 0 : i64, scratch_operands = 0 : i64, tpu.core_type = #tpu.core_type<tc>, window_params = [{transform_indices = @transform_0, window_bounds = array<i64: 8, 4>}, {transform_indices = @transform_1, window_bounds = array<i64: 8, 4>}, {transform_indices = @transform_2, window_bounds = array<i64: 8, 64>}, {pipeline_mode = #tpu.pipeline_mode<synchronous>, transform_indices = @transform_3, window_bounds = array<i64: 4, 64>}, {transform_indices = @transform_4, window_bounds = array<i64: 1, 1, 8>}, {transform_indices = @transform_5, window_bounds = array<i64: 1, 1, 8>}]} {
    %c0 = arith.constant 0 : index
    %c0_0 = arith.constant 0 : index
    %0 = vector.load %arg3[%c0, %c0_0] : memref<8x64xf32, #tpu.memory_space<vmem>>, vector<8x64xf32>
    %c0_1 = arith.constant 0 : index
    %c0_2 = arith.constant 0 : index
    %1 = vector.load %arg4[%c0_1, %c0_2] : memref<4x64xf32, #tpu.memory_space<vmem>>, vector<4x64xf32>
    %cst = arith.constant dense<0.000000e+00> : vector<8x4xf32>
    %2 = tpu.matmul %0, %1, %cst {dimension_numbers = #tpu.dot_dimension_numbers<[1], [1], [0], [0], [0, 0, 1, 0], [], []>} : vector<8x64xf32>, vector<4x64xf32>, vector<8x4xf32> -> vector<8x4xf32>
    %cst_3 = arith.constant dense<0xFF800000> : vector<8xf32>
    %3 = vector.multi_reduction <maximumf>, %2, %cst_3 [1] : vector<8x4xf32> to vector<8xf32>
    %4 = vector.shape_cast %3 : vector<8xf32> to vector<8x1xf32>
    %5 = vector.broadcast %4 : vector<8x1xf32> to vector<8x4xf32>
    %6 = arith.subf %2, %5 : vector<8x4xf32>
    %7 = math.exp %6 : vector<8x4xf32>
    %cst_4 = arith.constant dense<0.000000e+00> : vector<8xf32>
    %8 = vector.multi_reduction <add>, %7, %cst_4 [1] : vector<8x4xf32> to vector<8xf32>
    %9 = vector.shape_cast %8 : vector<8xf32> to vector<8x1xf32>
    %10 = tpu.reciprocal %9 : vector<8x1xf32> -> vector<8x1xf32>
    %cst_5 = arith.constant 2.000000e+00 : f32
    %11 = vector.broadcast %cst_5 : f32 to vector<8x4xf32>
    %12 = arith.mulf %11, %7 : vector<8x4xf32>
    %13 = vector.broadcast %10 : vector<8x1xf32> to vector<8x4xf32>
    %14 = arith.mulf %12, %13 : vector<8x4xf32>
    %c0_6 = arith.constant 0 : index
    %c0_7 = arith.constant 0 : index
    %15 = vector.load %arg1[%c0_6, %c0_7] : memref<8x4xf32, #tpu.memory_space<vmem>>, vector<8x4xf32>
    %c0_8 = arith.constant 0 : index
    %c0_9 = arith.constant 0 : index
    %16 = vector.load %arg2[%c0_8, %c0_9] : memref<8x4xf32, #tpu.memory_space<vmem>>, vector<8x4xf32>
    %17 = arith.mulf %14, %15 : vector<8x4xf32>
    %18 = arith.mulf %17, %16 : vector<8x4xf32>
    %cst_10 = arith.constant 1.000000e+00 : f32
    %19 = vector.broadcast %cst_10 : f32 to vector<1x4xf32>
    %cst_11 = arith.constant dense<0.000000e+00> : vector<1x8xf32>
    %20 = tpu.matmul %19, %18, %cst_11 {dimension_numbers = #tpu.dot_dimension_numbers<[1], [1], [0], [0], [0, 0, 1, 0], [], []>} : vector<1x4xf32>, vector<8x4xf32>, vector<1x8xf32> -> vector<1x8xf32>
    %c0_12 = arith.constant 0 : index
    %c0_13 = arith.constant 0 : index
    %c0_14 = arith.constant 0 : index
    %21 = vector.load %arg5[%c0_12, %c0_13, %c0_14] : memref<1x1x8xf32, #tpu.memory_space<vmem>>, vector<1x1x8xf32>
    %22 = vector.shape_cast %21 : vector<1x1x8xf32> to vector<1x8xf32>
    %23 = arith.subf %20, %22 : vector<1x8xf32>
    %cst_15 = arith.constant 8.000000e-01 : f32
    %24 = vector.broadcast %cst_15 : f32 to vector<1x8xf32>
    %25 = arith.mulf %23, %24 : vector<1x8xf32>
    %26 = vector.shape_cast %25 : vector<1x8xf32> to vector<1x1x8xf32>
    %c0_16 = arith.constant 0 : index
    %c0_17 = arith.constant 0 : index
    %c0_18 = arith.constant 0 : index
    %27 = vector.load %arg6[%c0_16, %c0_17, %c0_18] : memref<1x1x8xf32, #tpu.memory_space<vmem>>, vector<1x1x8xf32>
    tpu.vector_store %arg6[%c0_16, %c0_17, %c0_18], %26 {strides = array<i32>} : memref<1x1x8xf32, #tpu.memory_space<vmem>>, vector<1x1x8xf32>,
    return
  }
  func.func @transform_0(%arg0: i32) -> (i32, i32) {
    %c0_i32 = arith.constant 0 : i32
    %c0_i32_0 = arith.constant 0 : i32
    return %arg0, %c0_i32 : i32, i32
  }
  func.func @transform_1(%arg0: i32) -> (i32, i32) {
    %c0_i32 = arith.constant 0 : i32
    %c0_i32_0 = arith.constant 0 : i32
    return %arg0, %c0_i32 : i32, i32
  }
  func.func @transform_2(%arg0: i32) -> (i32, i32) {
    %c0_i32 = arith.constant 0 : i32
    %c0_i32_0 = arith.constant 0 : i32
    return %arg0, %c0_i32 : i32, i32
  }
  func.func @transform_3(%arg0: i32) -> (i32, i32) {
    %c0_i32 = arith.constant 0 : i32
    %c0_i32_0 = arith.constant 0 : i32
    %c0_i32_1 = arith.constant 0 : i32
    return %c0_i32, %c0_i32_0 : i32, i32
  }
  func.func @transform_4(%arg0: i32) -> (i32, i32, i32) {
    %c0_i32 = arith.constant 0 : i32
    %c0_i32_0 = arith.constant 0 : i32
    %c0_i32_1 = arith.constant 0 : i32
    return %arg0, %c0_i32, %c0_i32_0 : i32, i32, i32
  }
  func.func @transform_5(%arg0: i32) -> (i32, i32, i32) {
    %c0_i32 = arith.constant 0 : i32
    %c0_i32_0 = arith.constant 0 : i32
    %c0_i32_1 = arith.constant 0 : i32
    return %arg0, %c0_i32, %c0_i32_0 : i32, i32, i32
  }
}

</mosaic_0001>

<llo_original>
// kernel: tpu_custom_call.1
$region0: #{tpu_custom_call.1}
  #allocation0 [shape = 'u32[]', space=smem, size = 0x4, offset = 0x4, fixed_abs, tag = 'smem constant byte address 0x4 - core index']
  #allocation1 [shape = 'u32[144,128]{1,0:T(1,128)}', space=vmem, size = 0x12000, scoped, tag = 'internal scratch']
  %s0 = inlined_call_operand.vmem [shape: f32[20,4], index: 0, kind: input, shape index: {}]
  %s1 = inlined_call_operand.vmem [shape: f32[20,4], index: 1, kind: input, shape index: {}]
  %s2 = inlined_call_operand.vmem [shape: f32[20,64], index: 2, kind: input, shape index: {}]
  %s3 = inlined_call_operand.vmem [shape: f32[4,64], index: 3, kind: input, shape index: {}]
  %s4 = inlined_call_operand.vmem [shape: f32[3,1,8], index: 4, kind: input, shape index: {}]
  %s5 = inlined_call_operand.hbm [shape: f32[3,1,8], index: 5, kind: output, shape index: {}]
  %s6 = sld [smem:[#allocation0]]
  $region53: #{tpu_custom_call.1} parent=0
    _
  %s8 = ssub.s32 1, %s6
  %s9 = scalar_select 0, %s8, %s6
  $region1: #{tpu_custom_call.1} parent=0
    #allocation2 [shape = 'u8[1024]{0}', space=vmem, size = 0x400, scoped, tag = 'output window, operand 0']
    #allocation3 [shape = 's32[2]{0}', space=sflag, size = 0x8, scoped, tag = 'scoped memory for tpu_custom_call.1']
    %10 = vsyncpa [#allocation3], 0
    %s11 = scalar_lea.sflag [#allocation3], 1
    %12 = vsyncpa %s11, 0
    loop: start=0, step=1, limit=5
    $region2: #{tpu_custom_call.1} parent=1 // loop_pre_header
      _
    $region3: #{tpu_custom_call.1} parent=1 // loop_header
      %s14 = sphi 0, %s18
      %p15 = scmp.ge.s32.totalorder %s14, 5
      %s24 = sphi 0, %s26
      %s27 = sphi 0, %s24
      %s28 = sphi 0, %s27
      %s44 = sphi 0, %s28
      %s50 = sphi 0, %s52
      %s53 = sphi 0, %s50
      %s54 = sphi 0, %s53
      %s70 = sphi 0, %s54
      %s76 = sphi 0, %s78
      %s79 = sphi 0, %s76
      %s80 = sphi 0, %s79
      %s96 = sphi 0, %s80
      %s100 = sphi 0, %s100
      %s102 = sphi 0, %s100
      %s103 = sphi 0, %s102
      %s117 = sphi 0, %s103
      %s123 = sphi 0, %s125
      %s126 = sphi 0, %s123
      %s127 = sphi 0, %s126
      %s143 = sphi 0, %s127
      %s149 = sphi 0, %s151
      %s152 = sphi 0, %s149
      %s153 = sphi 0, %s152
      %s169 = sphi 0, %s153
    $region4: #{tpu_custom_call.1} parent=1 // loop_header_branch
      %17 = sbr.rel (%p15) target = $region8
    $region5: #{tpu_custom_call.1} parent=1 // loop_body
      %s19 = ssub.s32 %s14, 1
      %s20 = ssub.s32 %s14, 2
      %s21 = sadd.s32 %s14, 1
      %s22 = ssub.s32 %s14, %s21
      %p23 = scmp.eq.s32.totalorder %s22, 0
      %s25 = sadd.s32 %s24, 1
      %s26 = scalar_select %p23, %s24, %s25
      %p29 = pneg %p23
      %p30 = scmp.eq.s32.totalorder %s14, 2
      %p31 = por %p29, %p30
      %p32 = scmp.ne.s32.totalorder %s24, %s27
      %p33 = scmp.eq.s32.totalorder %s14, 0
      %p34 = por %p32, %p33
      %p35 = scmp.ne.s32.totalorder %s24, %s27
      %p36 = scmp.eq.s32.totalorder %s19, 2
      %p37 = por %p35, %p36
      %p38 = scmp.ne.s32.totalorder %s27, %s28
      %p39 = scmp.eq.s32.totalorder %s19, 0
      %p40 = por %p38, %p39
      %p41 = scmp.ne.s32.totalorder %s27, %s28
      %p42 = scmp.eq.s32.totalorder %s20, 2
      %p43 = por %p41, %p42
      %p45 = scmp.ne.s32.totalorder %s28, %s44
      %p46 = scmp.eq.s32.totalorder %s20, 0
      %p47 = por %p45, %p46
      %s48 = ssub.s32 %s14, %s21
      %p49 = scmp.eq.s32.totalorder %s48, 0
      %s51 = sadd.s32 %s50, 1
      %s52 = scalar_select %p49, %s50, %s51
      %p55 = pneg %p49
      %p56 = scmp.eq.s32.totalorder %s14, 2
      %p57 = por %p55, %p56
      %p58 = scmp.ne.s32.totalorder %s50, %s53
      %p59 = scmp.eq.s32.totalorder %s14, 0
      %p60 = por %p58, %p59
      %p61 = scmp.ne.s32.totalorder %s50, %s53
      %p62 = scmp.eq.s32.totalorder %s19, 2
      %p63 = por %p61, %p62
      %p64 = scmp.ne.s32.totalorder %s53, %s54
      %p65 = scmp.eq.s32.totalorder %s19, 0
      %p66 = por %p64, %p65
      %p67 = scmp.ne.s32.totalorder %s53, %s54
      %p68 = scmp.eq.s32.totalorder %s20, 2
      %p69 = por %p67, %p68
      %p71 = scmp.ne.s32.totalorder %s54, %s70
      %p72 = scmp.eq.s32.totalorder %s20, 0
      %p73 = por %p71, %p72
      %s74 = ssub.s32 %s14, %s21
      %p75 = scmp.eq.s32.totalorder %s74, 0
      %s77 = sadd.s32 %s76, 1
      %s78 = scalar_select %p75, %s76, %s77
      %p81 = pneg %p75
      %p82 = scmp.eq.s32.totalorder %s14, 2
      %p83 = por %p81, %p82
      %p84 = scmp.ne.s32.totalorder %s76, %s79
      %p85 = scmp.eq.s32.totalorder %s14, 0
      %p86 = por %p84, %p85
      %p87 = scmp.ne.s32.totalorder %s76, %s79
      %p88 = scmp.eq.s32.totalorder %s19, 2
      %p89 = por %p87, %p88
      %p90 = scmp.ne.s32.totalorder %s79, %s80
      %p91 = scmp.eq.s32.totalorder %s19, 0
      %p92 = por %p90, %p91
      %p93 = scmp.ne.s32.totalorder %s79, %s80
      %p94 = scmp.eq.s32.totalorder %s20, 2
      %p95 = por %p93, %p94
      %p97 = scmp.ne.s32.totalorder %s80, %s96
      %p98 = scmp.eq.s32.totalorder %s20, 0
      %p99 = por %p97, %p98
      %s101 = sadd.s32 %s100, 1
      %p104 = scmp.eq.s32.totalorder %s14, 2
      %p105 = scmp.ne.s32.totalorder %s100, %s102
      %p106 = scmp.eq.s32.totalorder %s14, 0
      %p107 = por %p105, %p106
      %p108 = scmp.ne.s32.totalorder %s100, %s102
      %p109 = scmp.eq.s32.totalorder %s19, 2
      %p110 = por %p108, %p109
      %p111 = scmp.ne.s32.totalorder %s102, %s103
      %p112 = scmp.eq.s32.totalorder %s19, 0
      %p113 = por %p111, %p112
      %p114 = scmp.ne.s32.totalorder %s102, %s103
      %p115 = scmp.eq.s32.totalorder %s20, 2
      %p116 = por %p114, %p115
      %p118 = scmp.ne.s32.totalorder %s103, %s117
      %p119 = scmp.eq.s32.totalorder %s20, 0
      %p120 = por %p118, %p119
      %s121 = ssub.s32 %s14, %s21
      %p122 = scmp.eq.s32.totalorder %s121, 0
      %s124 = sadd.s32 %s123, 1
      %s125 = scalar_select %p122, %s123, %s124
      %p128 = pneg %p122
      %p129 = scmp.eq.s32.totalorder %s14, 2
      %p130 = por %p128, %p129
      %p131 = scmp.ne.s32.totalorder %s123, %s126
      %p132 = scmp.eq.s32.totalorder %s14, 0
      %p133 = por %p131, %p132
      %p134 = scmp.ne.s32.totalorder %s123, %s126
      %p135 = scmp.eq.s32.totalorder %s19, 2
      %p136 = por %p134, %p135
      %p137 = scmp.ne.s32.totalorder %s126, %s127
      %p138 = scmp.eq.s32.totalorder %s19, 0
      %p139 = por %p137, %p138
      %p140 = scmp.ne.s32.totalorder %s126, %s127
      %p141 = scmp.eq.s32.totalorder %s20, 2
      %p142 = por %p140, %p141
      %p144 = scmp.ne.s32.totalorder %s127, %s143
      %p145 = scmp.eq.s32.totalorder %s20, 0
      %p146 = por %p144, %p145
      %s147 = ssub.s32 %s14, %s21
      %p148 = scmp.eq.s32.totalorder %s147, 0
      %s150 = sadd.s32 %s149, 1
      %s151 = scalar_select %p148, %s149, %s150
      %p154 = pneg %p148
      %p155 = scmp.eq.s32.totalorder %s14, 2
      %p156 = por %p154, %p155
      %p157 = scmp.ne.s32.totalorder %s149, %s152
      %p158 = scmp.eq.s32.totalorder %s14, 0
      %p159 = por %p157, %p158
      %p160 = scmp.ne.s32.totalorder %s149, %s152
      %p161 = scmp.eq.s32.totalorder %s19, 2
      %p162 = por %p160, %p161
      %p163 = scmp.ne.s32.totalorder %s152, %s153
      %p164 = scmp.eq.s32.totalorder %s19, 0
      %p165 = por %p163, %p164
      %p166 = scmp.ne.s32.totalorder %s152, %s153
      %p167 = scmp.eq.s32.totalorder %s20, 2
      %p168 = por %p166, %p167
      %p170 = scmp.ne.s32.totalorder %s153, %s169
      %p171 = scmp.eq.s32.totalorder %s20, 0
      %p172 = por %p170, %p171
      %p173 = scmp.le.s32.totalorder 1, %s14
      %p174 = scmp.lt.s32.totalorder %s14, 4
      %p175 = pnand %p173, %p174
      %p176 = pneg %p175
      // Predicated region
      $region9: #{tpu_custom_call.1} parent=5 // pred_check
        _
      $region10: #{tpu_custom_call.1} parent=5 // pred_check_branch
        %178 = sbr.rel (%p175) target = $region12
      $region11: #{tpu_custom_call.1} parent=5 // pred_region
        %s179 = ssub.s32 %s14, 1
        // Predicated region
        $region13: #{tpu_custom_call.1} parent=11 // pred_check
          %p180 = pneg %p113
        $region14: #{tpu_custom_call.1} parent=11 // pred_check_branch
          %182 = sbr.rel (%p180) target = $region16
        $region15: #{tpu_custom_call.1} parent=11 // pred_region
          _
        $region16: #{tpu_custom_call.1} parent=11 // pred_fallthru
          _
      $region12: #{tpu_custom_call.1} parent=5 // pred_fallthru
        _
      %p183 = scmp.lt.s32.totalorder %s14, 3
      // Predicated region
      $region17: #{tpu_custom_call.1} parent=5 // pred_check
        %p184 = pneg %p183
      $region18: #{tpu_custom_call.1} parent=5 // pred_check_branch
        %186 = sbr.rel (%p184) target = $region20
      $region19: #{tpu_custom_call.1} parent=5 // pred_region
        // Predicated region
        $region21: #{tpu_custom_call.1} parent=19 // pred_check
          %p187 = pneg %p34
        $region22: #{tpu_custom_call.1} parent=19 // pred_check_branch
          %189 = sbr.rel (%p187) target = $region24
        $region23: #{tpu_custom_call.1} parent=19 // pred_region
          %p190 = scmp.lt.s32.totalorder %s14, 2
          %s191 = scalar_select %p190, %s14, 2
          %s192 = smul.addr %s191, 8
          %s193 = scalar_lea.vmem %s0, %s192
        $region24: #{tpu_custom_call.1} parent=19 // pred_fallthru
          _
        // Predicated region
        $region25: #{tpu_custom_call.1} parent=19 // pred_check
          %p194 = pneg %p60
        $region26: #{tpu_custom_call.1} parent=19 // pred_check_branch
          %196 = sbr.rel (%p194) target = $region28
        $region27: #{tpu_custom_call.1} parent=19 // pred_region
          %p197 = scmp.lt.s32.totalorder %s14, 2
          %s198 = scalar_select %p197, %s14, 2
          %s199 = smul.addr %s198, 8
          %s200 = scalar_lea.vmem %s1, %s199
        $region28: #{tpu_custom_call.1} parent=19 // pred_fallthru
          _
        // Predicated region
        $region29: #{tpu_custom_call.1} parent=19 // pred_check
          %p201 = pneg %p86
        $region30: #{tpu_custom_call.1} parent=19 // pred_check_branch
          %203 = sbr.rel (%p201) target = $region32
        $region31: #{tpu_custom_call.1} parent=19 // pred_region
          %p204 = scmp.lt.s32.totalorder %s14, 2
          %s205 = scalar_select %p204, %s14, 2
          %s206 = smul.addr %s205, 8
          %s207 = scalar_lea.vmem %s2, %s206
        $region32: #{tpu_custom_call.1} parent=19 // pred_fallthru
          _
        // Predicated region
        $region33: #{tpu_custom_call.1} parent=19 // pred_check
          %p208 = pneg %p133
        $region34: #{tpu_custom_call.1} parent=19 // pred_check_branch
          %210 = sbr.rel (%p208) target = $region36
        $region35: #{tpu_custom_call.1} parent=19 // pred_region
          %p211 = scmp.lt.s32.totalorder %s14, 2
          %s212 = scalar_select %p211, %s14, 2
          %s213 = scalar_lea.vmem %s4, %s212
        $region36: #{tpu_custom_call.1} parent=19 // pred_fallthru
          _
      $region20: #{tpu_custom_call.1} parent=5 // pred_fallthru
        _
      %p214 = scmp.le.s32.totalorder 1, %s14
      %p215 = scmp.lt.s32.totalorder %s14, 4
      %p216 = pnand %p214, %p215
      %p217 = pneg %p216
      // Predicated region
      $region37: #{tpu_custom_call.1} parent=5 // pred_check
        _
      $region38: #{tpu_custom_call.1} parent=5 // pred_check_branch
        %219 = sbr.rel (%p216) target = $region40
      $region39: #{tpu_custom_call.1} parent=5 // pred_region
        %s220 = ssub.s32 %s14, 1
        %p221 = scmp.lt.s32.totalorder %s19, 2
        %s222 = scalar_select %p221, %s19, 2
        %s223 = smul.addr %s222, 8
        %s224 = scalar_lea.vmem %s0, %s223
        %p225 = pneg %p40
        %p226 = pneg %p37
        %p227 = scmp.lt.s32.totalorder %s19, 2
        %s228 = scalar_select %p227, %s19, 2
        %s229 = smul.addr %s228, 8
        %s230 = scalar_lea.vmem %s1, %s229
        %p231 = pneg %p66
        %p232 = pneg %p63
        %p233 = scmp.lt.s32.totalorder %s19, 2
        %s234 = scalar_select %p233, %s19, 2
        %s235 = smul.addr %s234, 8
        %s236 = scalar_lea.vmem %s2, %s235
        %p237 = pneg %p92
        %p238 = pneg %p89
        %p239 = pneg %p113
        %p240 = pneg %p110
        %p241 = scmp.lt.s32.totalorder %s19, 2
        %s242 = scalar_select %p241, %s19, 2
        %s243 = scalar_lea.vmem %s4, %s242
        %p244 = pneg %p139
        %p245 = pneg %p136
        %p246 = pneg %p165
        %p247 = pneg %p162
        %s248 = sand.u32 %s152, 1
        %s249 = scalar_lea.sflag [#allocation3], %s248
        %s250 = sand.u32 %s152, 1
        %s251 = scalar_lea.vmem [#allocation2], %s250
        %p252 = scmp.lt.s32.totalorder %s19, 2
        %s253 = scalar_select %p252, %s19, 2
        %s254 = smul.addr %s253, 8
        %s255 = scalar_lea.vmem %s0, %s254
        %p256 = scmp.lt.s32.totalorder %s19, 2
        %s257 = scalar_select %p256, %s19, 2
        %s258 = smul.addr %s257, 8
        %s259 = scalar_lea.vmem %s1, %s258
        %p260 = scmp.lt.s32.totalorder %s19, 2
        %s261 = scalar_select %p260, %s19, 2
        %s262 = smul.addr %s261, 8
        %s263 = scalar_lea.vmem %s2, %s262
        %p264 = scmp.lt.s32.totalorder %s19, 2
        %s265 = scalar_select %p264, %s19, 2
        %s266 = scalar_lea.vmem %s4, %s265
        %v267 = vld [vmem:[%s263] sm:$0xff]
        %v268 = vld [vmem:[%s3] sm:$0xf]
        %vm269 = vcmask 523264
        %v271 = vsel %vm269, %v267, 0
        %v274 = vsel %vm269, %v268, 0
        %276 = vmatprep.subr.mxu0 0.0
        %277 = vmatpush1.xpose.msra.mxu0 %v274
        %278 = vmatprep.subr.mxu0 0.0
        %279 = vmatpush1.xpose.msra.mxu0 0.0
        %280 = vmatprep.subr.mxu0 0.0
        %281 = vmatpush1.xpose.msra.mxu0 0.0
        %282 = vmatprep.subr.mxu0 0.0
        %283 = vmatpush1.xpose.msra.mxu0 0.0
        %284 = vmatprep.subr.mxu0 0.0
        %285 = vmatpush1.xpose.msra.mxu0 0.0
        %286 = vmatprep.subr.mxu0 0.0
        %287 = vmatpush1.xpose.msra.mxu0 0.0
        %288 = vmatprep.subr.mxu0 0.0
        %289 = vmatpush1.xpose.msra.mxu0 0.0
        %290 = vmatprep.subr.mxu0 0.0
        %291 = vmatpush1.xpose.msra.mxu0 0.0
        %292 = vmatprep.subr.mxu0 0.0
        %293 = vmatpush1.xpose.msra.mxu0 0.0
        %294 = vmatprep.subr.mxu0 0.0
        %295 = vmatpush1.xpose.msra.mxu0 0.0
        %296 = vmatprep.subr.mxu0 0.0
        %297 = vmatpush1.xpose.msra.mxu0 0.0
        %298 = vmatprep.subr.mxu0 0.0
        %299 = vmatpush1.xpose.msra.mxu0 0.0
        %300 = vmatprep.subr.mxu0 0.0
        %301 = vmatpush1.xpose.msra.mxu0 0.0
        %302 = vmatprep.subr.mxu0 0.0
        %303 = vmatpush1.xpose.msra.mxu0 0.0
        %304 = vmatprep.subr.mxu0 0.0
        %305 = vmatpush1.xpose.msra.mxu0 0.0
        %306 = vmatprep.subr.mxu0 0.0
        %307 = vmatpush1.xpose.msra.mxu0 0.0
        %308 = vmatprep.subr.mxu0 0.0
        %309 = vmatpush1.xpose.msra.mxu0 0.0
        %310 = vmatprep.subr.mxu0 0.0
        %311 = vmatpush1.xpose.msra.mxu0 0.0
        %312 = vmatprep.subr.mxu0 0.0
        %313 = vmatpush1.xpose.msra.mxu0 0.0
        %314 = vmatprep.subr.mxu0 0.0
        %315 = vmatpush1.xpose.msra.mxu0 0.0
        %316 = vmatprep.subr.mxu0 0.0
        %317 = vmatpush1.xpose.msra.mxu0 0.0
        %318 = vmatprep.subr.mxu0 0.0
        %319 = vmatpush1.xpose.msra.mxu0 0.0
        %320 = vmatprep.subr.mxu0 0.0
        %321 = vmatpush1.xpose.msra.mxu0 0.0
        %322 = vmatprep.subr.mxu0 0.0
        %323 = vmatpush1.xpose.msra.mxu0 0.0
        %324 = vmatprep.subr.mxu0 0.0
        %325 = vmatpush1.xpose.msra.mxu0 0.0
        %326 = vmatprep.subr.mxu0 0.0
        %327 = vmatpush1.xpose.msra.mxu0 0.0
        %328 = vmatprep.subr.mxu0 0.0
        %329 = vmatpush1.xpose.msra.mxu0 0.0
        %330 = vmatprep.subr.mxu0 0.0
        %331 = vmatpush1.xpose.msra.mxu0 0.0
        %332 = vmatprep.subr.mxu0 0.0
        %333 = vmatpush1.xpose.msra.mxu0 0.0
        %334 = vmatprep.subr.mxu0 0.0
        %335 = vmatpush1.xpose.msra.mxu0 0.0
        %336 = vmatprep.subr.mxu0 0.0
        %337 = vmatpush1.xpose.msra.mxu0 0.0
        %338 = vmatprep.subr.mxu0 0.0
        %339 = vmatpush1.xpose.msra.mxu0 0.0
        %340 = vmatprep.mubr.f32.mxu0 0.0
        %341 = vmatmul.mubr.f32.gmra.mrb[0].mxu0 %v271
        %v342 = vpop.f32.mrb[0].mxu0
        %v343 = vadd.f32 0.0, %v342
        %v344 = vpop.f32.mrb[0].mxu0
        %345 = vdwg.mxu0
        %vm346 = vcmask 31744
        %v347 = vsel %vm346, %v343, -inf
        %348 = vmax.xlane.f32.xlu0 %v347
        %v349 = vpop.xlane.xlu0 %348
        %v350 = vsub.f32 %v343, %v349
        %v351 = vmul.f32 %v350, 1.442695
        %v352 = vpow.pop %v351
        %v353 = vsel %vm346, %v352, 0.0
        %354 = vadd.xlane.f32.xlu0 %v353
        %v355 = vpop.xlane.xlu0 %354
        %v356 = vrcp.pop %v355
        %v357 = vmul.f32 %v352, 2.0
        %v358 = vmul.f32 %v357, %v356
        %v359 = vld [vmem:[%s255] sm:$0xff]
        %v360 = vld [vmem:[%s259] sm:$0xff]
        %v361 = vmul.f32 %v358, %v359
        %v362 = vmul.f32 %v361, %v360
        %v364 = vsel %vm346, 1.0, 0
        %v367 = vsel %vm346, %v362, 0
        %369 = vmatprep.subr.mxu0 0.0
        %370 = vmatpush1.xpose.msra.mxu0 %v367
        %371 = vmatprep.subr.mxu0 0.0
        %372 = vmatpush1.xpose.msra.mxu0 0.0
        %373 = vmatprep.subr.mxu0 0.0
        %374 = vmatpush1.xpose.msra.mxu0 0.0
        %375 = vmatprep.subr.mxu0 0.0
        %376 = vmatpush1.xpose.msra.mxu0 0.0
        %377 = vmatprep.subr.mxu0 0.0
        %378 = vmatpush1.xpose.msra.mxu0 0.0
        %379 = vmatprep.subr.mxu0 0.0
        %380 = vmatpush1.xpose.msra.mxu0 0.0
        %381 = vmatprep.subr.mxu0 0.0
        %382 = vmatpush1.xpose.msra.mxu0 0.0
        %383 = vmatprep.subr.mxu0 0.0
        %384 = vmatpush1.xpose.msra.mxu0 0.0
        %385 = vmatprep.subr.mxu0 0.0
        %386 = vmatpush1.xpose.msra.mxu0 0.0
        %387 = vmatprep.subr.mxu0 0.0
        %388 = vmatpush1.xpose.msra.mxu0 0.0
        %389 = vmatprep.subr.mxu0 0.0
        %390 = vmatpush1.xpose.msra.mxu0 0.0
        %391 = vmatprep.subr.mxu0 0.0
        %392 = vmatpush1.xpose.msra.mxu0 0.0
        %393 = vmatprep.subr.mxu0 0.0
        %394 = vmatpush1.xpose.msra.mxu0 0.0
        %395 = vmatprep.subr.mxu0 0.0
        %396 = vmatpush1.xpose.msra.mxu0 0.0
        %397 = vmatprep.subr.mxu0 0.0
        %398 = vmatpush1.xpose.msra.mxu0 0.0
        %399 = vmatprep.subr.mxu0 0.0
        %400 = vmatpush1.xpose.msra.mxu0 0.0
        %401 = vmatprep.subr.mxu0 0.0
        %402 = vmatpush1.xpose.msra.mxu0 0.0
        %403 = vmatprep.subr.mxu0 0.0
        %404 = vmatpush1.xpose.msra.mxu0 0.0
        %405 = vmatprep.subr.mxu0 0.0
        %406 = vmatpush1.xpose.msra.mxu0 0.0
        %407 = vmatprep.subr.mxu0 0.0
        %408 = vmatpush1.xpose.msra.mxu0 0.0
        %409 = vmatprep.subr.mxu0 0.0
        %410 = vmatpush1.xpose.msra.mxu0 0.0
        %411 = vmatprep.subr.mxu0 0.0
        %412 = vmatpush1.xpose.msra.mxu0 0.0
        %413 = vmatprep.subr.mxu0 0.0
        %414 = vmatpush1.xpose.msra.mxu0 0.0
        %415 = vmatprep.subr.mxu0 0.0
        %416 = vmatpush1.xpose.msra.mxu0 0.0
        %417 = vmatprep.subr.mxu0 0.0
        %418 = vmatpush1.xpose.msra.mxu0 0.0
        %419 = vmatprep.subr.mxu0 0.0
        %420 = vmatpush1.xpose.msra.mxu0 0.0
        %421 = vmatprep.subr.mxu0 0.0
        %422 = vmatpush1.xpose.msra.mxu0 0.0
        %423 = vmatprep.subr.mxu0 0.0
        %424 = vmatpush1.xpose.msra.mxu0 0.0
        %425 = vmatprep.subr.mxu0 0.0
        %426 = vmatpush1.xpose.msra.mxu0 0.0
        %427 = vmatprep.subr.mxu0 0.0
        %428 = vmatpush1.xpose.msra.mxu0 0.0
        %429 = vmatprep.subr.mxu0 0.0
        %430 = vmatpush1.xpose.msra.mxu0 0.0
        %431 = vmatprep.subr.mxu0 0.0
        %432 = vmatpush1.xpose.msra.mxu0 0.0
        %433 = vmatprep.mubr.f32.mxu0 0.0
        %434 = vmatmul.mubr.f32.gmra.mrb[0].mxu0 %v364
        %v435 = vpop.f32.mrb[0].mxu0
        %v436 = vadd.f32 0.0, %v435
        %v437 = vpop.f32.mrb[0].mxu0
        %438 = vdwg.mxu0
        %v439 = vld [vmem:[%s266] sm:$0x1]
        %v440 = vsub.f32 %v436, %v439
        %v441 = vmul.f32 %v440, 0.8
        %vm442 = vcmask 57344
        %443 = vst.msk [vmem:[%s251] sm:$0x1] %vm442, %v441
        %s444 = sand.u32 %s152, 1
        %s445 = scalar_lea.sflag [#allocation3], %s444
        %s446 = sand.u32 %s152, 1
        %s447 = scalar_lea.vmem [#allocation2], %s446
        // Predicated region
        $region41: #{tpu_custom_call.1} parent=39 // pred_check
          %p448 = pneg %p162
        $region42: #{tpu_custom_call.1} parent=39 // pred_check_branch
          %450 = sbr.rel (%p448) target = $region44
        $region43: #{tpu_custom_call.1} parent=39 // pred_region
          %s452 = ssub.s32 16, 16
          %453 = vsyncadd %s445, %s452
          %s454 = smul.addr %s19, 16
          %s455 = scalar_lea.hbm %s5, %s454
          %s457 = sshll.u32 %s447, 4
          %s458 = int_to_ptr.vmem [resolvable:$true] %s457
          %460 = dma.vmem_to_hbm [thread:$0]  %s458, 16, %s455, %s445
        $region44: #{tpu_custom_call.1} parent=39 // pred_fallthru
          _
      $region40: #{tpu_custom_call.1} parent=5 // pred_fallthru
        _
      %p461 = scmp.le.s32.totalorder 2, %s14
      // Predicated region
      $region45: #{tpu_custom_call.1} parent=5 // pred_check
        %p462 = pneg %p461
      $region46: #{tpu_custom_call.1} parent=5 // pred_check_branch
        %464 = sbr.rel (%p462) target = $region48
      $region47: #{tpu_custom_call.1} parent=5 // pred_region
        %s465 = ssub.s32 %s14, 2
        // Predicated region
        $region49: #{tpu_custom_call.1} parent=47 // pred_check
          %p466 = pneg %p168
        $region50: #{tpu_custom_call.1} parent=47 // pred_check_branch
          %468 = sbr.rel (%p466) target = $region52
        $region51: #{tpu_custom_call.1} parent=47 // pred_region
          %s469 = sand.u32 %s153, 1
          %s470 = scalar_lea.sflag [#allocation3], %s469
          %s471 = sand.u32 %s153, 1
          %s472 = scalar_lea.vmem [#allocation2], %s471
          %473 = dma.done %s470, 16
        $region52: #{tpu_custom_call.1} parent=47 // pred_fallthru
          _
      $region48: #{tpu_custom_call.1} parent=5 // pred_fallthru
        _
    $region6: #{tpu_custom_call.1} parent=1 // loop_footer
      %s18 = sadd.s32 1, %s14
    $region7: #{tpu_custom_call.1} parent=1 // loop_footer_branch
      %13 = sbr.rel target = $region3
    $region8: #{tpu_custom_call.1} parent=1 // loop_exit
      _
    %474 = vsyncpa [#allocation3], 1
    %s475 = scalar_lea.sflag [#allocation3], 1
    %476 = vsyncpa %s475, 1

</llo_original>
